<compile_context>
chip_gen: v7x
topology: tpu7x:2x2x1
jax: 0.10.0
libtpu: 0.0.40
codegen_flags: <defaults>
</compile_context>

<pallas_src>
import jax
import jax.numpy as jnp
from jax.experimental import pallas as pl
from jax.experimental.pallas import tpu as pltpu

BN_EPS = 1e-5
LANE = 128


def _round_up(n, m):
    return ((n + m - 1) // m) * m


def _pad_last(a, target):
    pad = target - a.shape[-1]
    if pad == 0:
        return a
    return jnp.pad(a, [(0, 0)] * (a.ndim - 1) + [(0, pad)])


def _pad2(a, rows, cols):
    return jnp.pad(a, [(0, rows - a.shape[0]), (0, cols - a.shape[1])])


# ---------------------------------------------------------------------------
# Kernel
# ---------------------------------------------------------------------------
def _linear_bn_relu(x, w, gamma, beta, inv_b):
    # No pre-BN bias: it cancels exactly under train-mode batch statistics.
    h = jnp.dot(x.astype(w.dtype), w, preferred_element_type=jnp.float32)
    # Single-pass batch statistics (biased variance, as PyTorch train-mode BN),
    # clamped against f32 cancellation going slightly negative.
    mean = jnp.sum(h, axis=0, keepdims=True) * inv_b
    ex2 = jnp.sum(h * h, axis=0, keepdims=True) * inv_b
    var = jnp.maximum(ex2 - mean * mean, 0.0)
    # Fold BN affine into a single scale/shift (2 elementwise passes, not 4).
    scale = gamma * jax.lax.rsqrt(var + BN_EPS)          # rsqrt -> EUP
    shift = beta - mean * scale
    return jnp.maximum(h * scale + shift, 0.0)


def hand_decoder_kernel(z_ref, w1_ref, w2_ref, w3_ref, vec_ref, out_ref):
    """vec_ref rows: 0=gamma1, 1=beta1, 2=gamma2, 3=beta2, 4=bias3, 5-7=unused."""
    inv_b = 1.0 / z_ref.shape[0]
    d1p = w1_ref.shape[1]
    d2p = w2_ref.shape[1]
    d3p = w3_ref.shape[1]

    x = z_ref[...]
    x = _linear_bn_relu(x, w1_ref[...],
                        vec_ref[0:1, :d1p], vec_ref[1:2, :d1p], inv_b)
    x = _linear_bn_relu(x, w2_ref[...],
                        vec_ref[2:3, :d2p], vec_ref[3:4, :d2p], inv_b)
    w3 = w3_ref[...]
    h = jnp.dot(x.astype(w3.dtype), w3,
                preferred_element_type=jnp.float32) + vec_ref[4:5, :d3p]
    out_ref[...] = jnp.tanh(h)                           # tanh -> EUP


# ---------------------------------------------------------------------------
# One-time parameter preparation (pad + cast, done at load time, NOT per call)
# ---------------------------------------------------------------------------
def prepare_params(params, matmul_dtype=jnp.bfloat16):
    """params: PyTorch-style [w1,b1,g1,be1, w2,b2,g2,be2, w3,b3] with Linear
    weights pre-transposed to (in_dim, out_dim).  b1/b2 are ignored (they
    cancel under train-mode BN).  Returns lane-padded bf16 weights and a
    packed (8, Dmax) f32 vector bank.  Padded lanes of gamma/beta/bias are
    exactly zero so they stay zero through BN/ReLU/tanh."""
    w1, _b1, g1, be1, w2, _b2, g2, be2, w3, b3 = params
    d0, d1 = w1.shape
    d2 = w2.shape[1]
    d3 = w3.shape[1]
    d0p, d1p, d2p, d3p = (_round_up(d, LANE) for d in (d0, d1, d2, d3))
    dmax = max(d1p, d2p, d3p)

    w1p = _pad2(w1, d0p, d1p).astype(matmul_dtype)
    w2p = _pad2(w2, d1p, d2p).astype(matmul_dtype)
    w3p = _pad2(w3, d2p, d3p).astype(matmul_dtype)

    vec = jnp.zeros((8, dmax), jnp.float32)
    vec = vec.at[0, :d1].set(g1.reshape(-1).astype(jnp.float32))
    vec = vec.at[1, :d1].set(be1.reshape(-1).astype(jnp.float32))
    vec = vec.at[2, :d2].set(g2.reshape(-1).astype(jnp.float32))
    vec = vec.at[3, :d2].set(be2.reshape(-1).astype(jnp.float32))
    vec = vec.at[4, :d3].set(b3.reshape(-1).astype(jnp.float32))

    w1p, w2p, w3p, vec = jax.device_put((w1p, w2p, w3p, vec))
    return w1p, w2p, w3p, vec


# ---------------------------------------------------------------------------
# Per-call wrapper (jit this).  Returns the lane-padded (B, d3p) output;
# the consumer reads the first d3 columns.
# ---------------------------------------------------------------------------
def hand_decoder(z, w1p, w2p, w3p, vec):
    d0p = w1p.shape[0]
    d3p = w3p.shape[1]
    B = z.shape[0]
    zp = _pad_last(z.reshape(B, -1).astype(jnp.float32), d0p)

    inputs = [zp, w1p, w2p, w3p, vec]
    in_specs = [pl.BlockSpec(memory_space=pltpu.MemorySpace.VMEM)
                for _ in inputs]

    d1p = w1p.shape[1]
    d2p = w2p.shape[1]
    flops = 2 * B * (d0p * d1p + d1p * d2p + d2p * d3p)
    transcendentals = B * d3p + 2 * (d1p + d2p)          # tanh + per-feature rsqrt
    bytes_accessed = sum(int(a.size) * a.dtype.itemsize for a in inputs) \
        + B * d3p * 4

    return pl.pallas_call(
        hand_decoder_kernel,
        out_shape=jax.ShapeDtypeStruct((B, d3p), jnp.float32),
        in_specs=in_specs,
        out_specs=pl.BlockSpec(memory_space=pltpu.MemorySpace.VMEM),
        cost_estimate=pl.CostEstimate(flops=flops,
                                      transcendentals=transcendentals,
                                      bytes_accessed=bytes_accessed),
    )(*inputs)


# ---------------------------------------------------------------------------
# Synthetic parameters + PyTorch-faithful pure-JAX reference
# ---------------------------------------------------------------------------
def make_params(key, decoder_dims):
    """Deterministic synthetic parameters for decoder_dims = [d0, d1, d2, d3].
    Matches the PyTorch module layout (Linear weights stored as (in, out))."""
    d0, d1, d2, d3 = decoder_dims
    ks = jax.random.split(key, 8)
    w1 = jax.random.normal(ks[0], (d0, d1), jnp.float32) * 0.1
    b1 = jax.random.normal(ks[1], (1, d1), jnp.float32) * 0.1
    g1 = 1.0 + jax.random.normal(ks[2], (1, d1), jnp.float32) * 0.05
    be1 = jax.random.normal(ks[3], (1, d1), jnp.float32) * 0.05
    w2 = jax.random.normal(ks[4], (d1, d2), jnp.float32) * 0.1
    b2 = jax.random.normal(ks[5], (1, d2), jnp.float32) * 0.1
    g2 = 1.0 + jax.random.normal(ks[6], (1, d2), jnp.float32) * 0.05
    be2 = jax.random.normal(ks[7], (1, d2), jnp.float32) * 0.05
    kw3, kb3 = jax.random.split(jax.random.fold_in(key, 123))
    w3 = jax.random.normal(kw3, (d2, d3), jnp.float32) * 0.1
    b3 = jax.random.normal(kb3, (1, d3), jnp.float32) * 0.1
    return [w1, b1, g1, be1, w2, b2, g2, be2, w3, b3]


def hand_decoder_ref(z, params):
    """Pure-JAX reference reproducing the PyTorch forward exactly
    (Linear WITH bias, train-mode BN with biased variance, two-pass stats)."""
    w1, b1, g1, be1, w2, b2, g2, be2, w3, b3 = params
    B = z.shape[0]
    x = z.reshape(B, -1)
    for (w, b, g, be) in [(w1, b1, g1, be1), (w2, b2, g2, be2)]:
        h = x @ w + b
        mean = h.mean(0, keepdims=True)
        var = ((h - mean) ** 2).mean(0, keepdims=True)
        h = (h - mean) / jnp.sqrt(var + BN_EPS) * g + be
        x = jnp.maximum(h, 0.0)
    return jnp.tanh(x @ w3 + b3)


if __name__ == "__main__":
    # cfg.MODEL.hand_vae.decoder_dims (small synthetic config)
    decoder_dims = [32, 64, 128, 48]
    B = 8
    d3 = decoder_dims[-1]

    key = jax.random.PRNGKey(0)
    kz, kp = jax.random.split(key)
    # data_dict['z'] — reshaped to (B, -1) inside forward, so give it (B, 2, 16)
    z = jax.random.normal(kz, (B, 2, 16), jnp.float32)
    params = make_params(kp, decoder_dims)

    ref = hand_decoder_ref(z, params)

    decode = jax.jit(hand_decoder)

    # f32 matmul path: tight check against the PyTorch-faithful reference
    # (also proves that dropping the pre-BN biases is a numerical no-op).
    prep_f32 = prepare_params(params, matmul_dtype=jnp.float32)
    out_f32 = jax.block_until_ready(decode(z, *prep_f32))
    assert out_f32.shape[0] == B and out_f32.shape[1] >= d3
    assert jnp.allclose(out_f32[:, :d3], ref, atol=1e-4, rtol=1e-4), \
        "f32 mismatch vs reference"
    # Padded lanes stay exactly zero (zero-padded gamma/beta/bias invariant).
    assert jnp.all(out_f32[:, d3:] == 0.0)

    # Default path: bf16 matmul operands (MXU-native on v5e/v6e/v7x),
    # f32 accumulate + f32 BN/ReLU/tanh epilogue.
    prep_bf16 = prepare_params(params)          # default matmul_dtype=bf16
    out_bf16 = jax.block_until_ready(decode(z, *prep_bf16))
    assert out_bf16.shape == out_f32.shape
    assert jnp.allclose(out_bf16[:, :d3], ref, atol=1e-1, rtol=1e-1), \
        "bf16 mismatch vs reference"

    print("KERNEL_OK")
</pallas_src>

<mosaic_0001>
module attributes {stable_mosaic.version = 11 : i64} {
  func.func @hand_decoder_kernel(%arg0: memref<8x128xf32, #tpu.memory_space<vmem>>, %arg1: memref<128x128xf32, #tpu.memory_space<vmem>>, %arg2: memref<128x128xf32, #tpu.memory_space<vmem>>, %arg3: memref<128x128xf32, #tpu.memory_space<vmem>>, %arg4: memref<8x128xf32, #tpu.memory_space<vmem>>, %arg5: memref<8x128xf32, #tpu.memory_space<vmem>>) attributes {dimension_semantics = [], scalar_prefetch = 0 : i64, scratch_operands = 0 : i64, tpu.core_type = #tpu.core_type<tc>} {
    %c0 = arith.constant 0 : index
    %c0_0 = arith.constant 0 : index
    %0 = vector.load %arg0[%c0, %c0_0] : memref<8x128xf32, #tpu.memory_space<vmem>>, vector<8x128xf32>
    %c0_1 = arith.constant 0 : index
    %c0_2 = arith.constant 0 : index
    %1 = vector.load %arg1[%c0_1, %c0_2] : memref<128x128xf32, #tpu.memory_space<vmem>>, vector<128x128xf32>
    %c0_3 = arith.constant 0 : index
    %c0_4 = arith.constant 0 : index
    %2 = vector.load %arg4[%c0_3, %c0_4] : memref<8x128xf32, #tpu.memory_space<vmem>>, vector<1x128xf32>
    %c1 = arith.constant 1 : index
    %c0_5 = arith.constant 0 : index
    %3 = vector.load %arg4[%c1, %c0_5] : memref<8x128xf32, #tpu.memory_space<vmem>>, vector<1x128xf32>
    %cst = arith.constant dense<0.000000e+00> : vector<8x128xf32>
    %4 = tpu.matmul %0, %1, %cst {dimension_numbers = #tpu.dot_dimension_numbers<[1], [0], [0], [1], [0, 0, 1, 1], [], []>} : vector<8x128xf32>, vector<128x128xf32>, vector<8x128xf32> -> vector<8x128xf32>
    %cst_6 = arith.constant dense<0.000000e+00> : vector<128xf32>
    %5 = vector.multi_reduction <add>, %4, %cst_6 [0] : vector<8x128xf32> to vector<128xf32>
    %6 = vector.shape_cast %5 : vector<128xf32> to vector<1x128xf32>
    %cst_7 = arith.constant 1.250000e-01 : f32
    %7 = vector.broadcast %cst_7 : f32 to vector<1x128xf32>
    %8 = arith.mulf %6, %7 : vector<1x128xf32>
    %9 = arith.mulf %4, %4 : vector<8x128xf32>
    %cst_8 = arith.constant dense<0.000000e+00> : vector<128xf32>
    %10 = vector.multi_reduction <add>, %9, %cst_8 [0] : vector<8x128xf32> to vector<128xf32>
    %11 = vector.shape_cast %10 : vector<128xf32> to vector<1x128xf32>
    %cst_9 = arith.constant 1.250000e-01 : f32
    %12 = vector.broadcast %cst_9 : f32 to vector<1x128xf32>
    %13 = arith.mulf %11, %12 : vector<1x128xf32>
    %14 = arith.mulf %8, %8 : vector<1x128xf32>
    %15 = arith.subf %13, %14 : vector<1x128xf32>
    %cst_10 = arith.constant 0.000000e+00 : f32
    %16 = vector.broadcast %cst_10 : f32 to vector<1x128xf32>
    %17 = arith.maximumf %15, %16 : vector<1x128xf32>
    %cst_11 = arith.constant 9.99999974E-6 : f32
    %18 = vector.broadcast %cst_11 : f32 to vector<1x128xf32>
    %19 = arith.addf %17, %18 : vector<1x128xf32>
    %20 = math.rsqrt %19 : vector<1x128xf32>
    %21 = arith.mulf %2, %20 : vector<1x128xf32>
    %22 = arith.mulf %8, %21 : vector<1x128xf32>
    %23 = arith.subf %3, %22 : vector<1x128xf32>
    %24 = vector.broadcast %21 : vector<1x128xf32> to vector<8x128xf32>
    %25 = arith.mulf %4, %24 : vector<8x128xf32>
    %26 = vector.broadcast %23 : vector<1x128xf32> to vector<8x128xf32>
    %27 = arith.addf %25, %26 : vector<8x128xf32>
    %cst_12 = arith.constant 0.000000e+00 : f32
    %28 = vector.broadcast %cst_12 : f32 to vector<8x128xf32>
    %29 = arith.maximumf %27, %28 : vector<8x128xf32>
    %c0_13 = arith.constant 0 : index
    %c0_14 = arith.constant 0 : index
    %30 = vector.load %arg2[%c0_13, %c0_14] : memref<128x128xf32, #tpu.memory_space<vmem>>, vector<128x128xf32>
    %c2 = arith.constant 2 : index
    %c0_15 = arith.constant 0 : index
    %31 = vector.load %arg4[%c2, %c0_15] : memref<8x128xf32, #tpu.memory_space<vmem>>, vector<1x128xf32>
    %c3 = arith.constant 3 : index
    %c0_16 = arith.constant 0 : index
    %32 = vector.load %arg4[%c3, %c0_16] : memref<8x128xf32, #tpu.memory_space<vmem>>, vector<1x128xf32>
    %cst_17 = arith.constant dense<0.000000e+00> : vector<8x128xf32>
    %33 = tpu.matmul %29, %30, %cst_17 {dimension_numbers = #tpu.dot_dimension_numbers<[1], [0], [0], [1], [0, 0, 1, 1], [], []>} : vector<8x128xf32>, vector<128x128xf32>, vector<8x128xf32> -> vector<8x128xf32>
    %cst_18 = arith.constant dense<0.000000e+00> : vector<128xf32>
    %34 = vector.multi_reduction <add>, %33, %cst_18 [0] : vector<8x128xf32> to vector<128xf32>
    %35 = vector.shape_cast %34 : vector<128xf32> to vector<1x128xf32>
    %cst_19 = arith.constant 1.250000e-01 : f32
    %36 = vector.broadcast %cst_19 : f32 to vector<1x128xf32>
    %37 = arith.mulf %35, %36 : vector<1x128xf32>
    %38 = arith.mulf %33, %33 : vector<8x128xf32>
    %cst_20 = arith.constant dense<0.000000e+00> : vector<128xf32>
    %39 = vector.multi_reduction <add>, %38, %cst_20 [0] : vector<8x128xf32> to vector<128xf32>
    %40 = vector.shape_cast %39 : vector<128xf32> to vector<1x128xf32>
    %cst_21 = arith.constant 1.250000e-01 : f32
    %41 = vector.broadcast %cst_21 : f32 to vector<1x128xf32>
    %42 = arith.mulf %40, %41 : vector<1x128xf32>
    %43 = arith.mulf %37, %37 : vector<1x128xf32>
    %44 = arith.subf %42, %43 : vector<1x128xf32>
    %cst_22 = arith.constant 0.000000e+00 : f32
    %45 = vector.broadcast %cst_22 : f32 to vector<1x128xf32>
    %46 = arith.maximumf %44, %45 : vector<1x128xf32>
    %cst_23 = arith.constant 9.99999974E-6 : f32
    %47 = vector.broadcast %cst_23 : f32 to vector<1x128xf32>
    %48 = arith.addf %46, %47 : vector<1x128xf32>
    %49 = math.rsqrt %48 : vector<1x128xf32>
    %50 = arith.mulf %31, %49 : vector<1x128xf32>
    %51 = arith.mulf %37, %50 : vector<1x128xf32>
    %52 = arith.subf %32, %51 : vector<1x128xf32>
    %53 = vector.broadcast %50 : vector<1x128xf32> to vector<8x128xf32>
    %54 = arith.mulf %33, %53 : vector<8x128xf32>
    %55 = vector.broadcast %52 : vector<1x128xf32> to vector<8x128xf32>
    %56 = arith.addf %54, %55 : vector<8x128xf32>
    %cst_24 = arith.constant 0.000000e+00 : f32
    %57 = vector.broadcast %cst_24 : f32 to vector<8x128xf32>
    %58 = arith.maximumf %56, %57 : vector<8x128xf32>
    %c0_25 = arith.constant 0 : index
    %c0_26 = arith.constant 0 : index
    %59 = vector.load %arg3[%c0_25, %c0_26] : memref<128x128xf32, #tpu.memory_space<vmem>>, vector<128x128xf32>
    %cst_27 = arith.constant dense<0.000000e+00> : vector<8x128xf32>
    %60 = tpu.matmul %58, %59, %cst_27 {dimension_numbers = #tpu.dot_dimension_numbers<[1], [0], [0], [1], [0, 0, 1, 1], [], []>} : vector<8x128xf32>, vector<128x128xf32>, vector<8x128xf32> -> vector<8x128xf32>
    %c4 = arith.constant 4 : index
    %c0_28 = arith.constant 0 : index
    %61 = vector.load %arg4[%c4, %c0_28] : memref<8x128xf32, #tpu.memory_space<vmem>>, vector<1x128xf32>
    %62 = vector.broadcast %61 : vector<1x128xf32> to vector<8x128xf32>
    %63 = arith.addf %60, %62 : vector<8x128xf32>
    %64 = math.tanh %63 : vector<8x128xf32>
    %c0_29 = arith.constant 0 : index
    %c0_30 = arith.constant 0 : index
    %65 = vector.load %arg5[%c0_29, %c0_30] : memref<8x128xf32, #tpu.memory_space<vmem>>, vector<8x128xf32>
    tpu.vector_store %arg5[%c0_29, %c0_30], %64 {strides = array<i32>} : memref<8x128xf32, #tpu.memory_space<vmem>>, vector<8x128xf32>,
    return
  }
}

</mosaic_0001>

<llo_original>
// kernel: hand_decoder.1
$region0: #{hand_decoder.1}
  #allocation0 [shape = 'u32[]', space=smem, size = 0x4, offset = 0x4, fixed_abs, tag = 'smem constant byte address 0x4 - core index']
  #allocation1 [shape = 'u32[144,128]{1,0:T(1,128)}', space=vmem, size = 0x12000, scoped, tag = 'internal scratch']
  %s0 = inlined_call_operand.vmem [shape: f32[8,128], index: 0, kind: input, shape index: {}]
  %s1 = inlined_call_operand.hbm [shape: f32[128,128], index: 1, kind: input, shape index: {}]
  %s2 = inlined_call_operand.hbm [shape: f32[128,128], index: 2, kind: input, shape index: {}]
  %s3 = inlined_call_operand.hbm [shape: f32[128,128], index: 3, kind: input, shape index: {}]
  %s4 = inlined_call_operand.vmem [shape: f32[8,128], index: 4, kind: input, shape index: {}]
  %s5 = inlined_call_operand.hbm [shape: f32[8,128], index: 5, kind: output, shape index: {}]
  %s6 = sld [smem:[#allocation0]]
  $region42: #{hand_decoder.1} parent=0
    _
  %s8 = ssub.s32 1, %s6
  %s9 = scalar_select 0, %s8, %s6
  $region1: #{hand_decoder.1} parent=0
    #allocation2 [shape = 'u8[65536]{0}', space=vmem, size = 0x10000, scoped, tag = 'input window, operand 1, single buffered']
    #allocation3 [shape = 's32[1]{0}', space=sflag, size = 0x4, scoped, tag = 'scoped memory for hand_decoder.1']
    #allocation4 [shape = 's32[1]{0}', space=sflag, size = 0x4, scoped, tag = 'scoped memory for hand_decoder.1']
    #allocation5 [shape = 'u8[65536]{0}', space=vmem, size = 0x10000, scoped, tag = 'input window, operand 2, single buffered']
    #allocation6 [shape = 's32[1]{0}', space=sflag, size = 0x4, scoped, tag = 'scoped memory for hand_decoder.1']
    #allocation7 [shape = 'u8[65536]{0}', space=vmem, size = 0x10000, scoped, tag = 'input window, operand 3, single buffered']
    #allocation8 [shape = 'u8[4096]{0}', space=vmem, size = 0x1000, scoped, tag = 'output window, operand 0, single buffered']
    %10 = vsyncpa [#allocation3], 0
    %11 = vsyncpa [#allocation6], 0
    %12 = vsyncpa [#allocation4], 0
    // Predicated region
    $region2: #{hand_decoder.1} parent=1 // pred_check
      _
    $region3: #{hand_decoder.1} parent=1 // pred_check_branch
      %14 = sbr.rel (0) target = $region5
    $region4: #{hand_decoder.1} parent=1 // pred_region
      _
    $region5: #{hand_decoder.1} parent=1 // pred_fallthru
      _
    // Predicated region
    $region6: #{hand_decoder.1} parent=1 // pred_check
      _
    $region7: #{hand_decoder.1} parent=1 // pred_check_branch
      %16 = sbr.rel (0) target = $region9
    $region8: #{hand_decoder.1} parent=1 // pred_region
      %s18 = ssub.s32 2048, 2048
      %19 = vsyncadd [#allocation3], %s18
      %s20 = sshll.u32 [#allocation2], 4
      %s21 = int_to_ptr.vmem [resolvable:$true] %s20
      %26 = dma.hbm_to_vmem [thread:$0]  %s1, 2048, %s21, [#allocation3], 128, 128, 8
    $region9: #{hand_decoder.1} parent=1 // pred_fallthru
      _
    // Predicated region
    $region10: #{hand_decoder.1} parent=1 // pred_check
      _
    $region11: #{hand_decoder.1} parent=1 // pred_check_branch
      %28 = sbr.rel (0) target = $region13
    $region12: #{hand_decoder.1} parent=1 // pred_region
      %s30 = ssub.s32 2048, 2048
      %31 = vsyncadd [#allocation6], %s30
      %s32 = sshll.u32 [#allocation5], 4
      %s33 = int_to_ptr.vmem [resolvable:$true] %s32
      %38 = dma.hbm_to_vmem [thread:$0]  %s2, 2048, %s33, [#allocation6], 128, 128, 8
    $region13: #{hand_decoder.1} parent=1 // pred_fallthru
      _
    // Predicated region
    $region14: #{hand_decoder.1} parent=1 // pred_check
      _
    $region15: #{hand_decoder.1} parent=1 // pred_check_branch
      %40 = sbr.rel (0) target = $region17
    $region16: #{hand_decoder.1} parent=1 // pred_region
      %s42 = ssub.s32 2048, 2048
      %43 = vsyncadd [#allocation6], %s42
      %s44 = sshll.u32 [#allocation7], 4
      %s45 = int_to_ptr.vmem [resolvable:$true] %s44
      %50 = dma.hbm_to_vmem [thread:$0]  %s3, 2048, %s45, [#allocation6], 128, 128, 8
    $region17: #{hand_decoder.1} parent=1 // pred_fallthru
      _
    // Predicated region
    $region18: #{hand_decoder.1} parent=1 // pred_check
      _
    $region19: #{hand_decoder.1} parent=1 // pred_check_branch
      %52 = sbr.rel (0) target = $region21
    $region20: #{hand_decoder.1} parent=1 // pred_region
      _
    $region21: #{hand_decoder.1} parent=1 // pred_fallthru
      _
    // Predicated region
    $region22: #{hand_decoder.1} parent=1 // pred_check
      _
    $region23: #{hand_decoder.1} parent=1 // pred_check_branch
      %54 = sbr.rel (0) target = $region25
    $region24: #{hand_decoder.1} parent=1 // pred_region
      %55 = dma.done [#allocation3], 2048
    $region25: #{hand_decoder.1} parent=1 // pred_fallthru
      _
    // Predicated region
    $region26: #{hand_decoder.1} parent=1 // pred_check
      _
    $region27: #{hand_decoder.1} parent=1 // pred_check_branch
      %57 = sbr.rel (0) target = $region29
    $region28: #{hand_decoder.1} parent=1 // pred_region
      %58 = dma.done [#allocation6], 2048
    $region29: #{hand_decoder.1} parent=1 // pred_fallthru
      _
    // Predicated region
    $region30: #{hand_decoder.1} parent=1 // pred_check
      _
    $region31: #{hand_decoder.1} parent=1 // pred_check_branch
      %60 = sbr.rel (0) target = $region33
    $region32: #{hand_decoder.1} parent=1 // pred_region
      %61 = dma.done [#allocation6], 2048
    $region33: #{hand_decoder.1} parent=1 // pred_fallthru
      _
    %v62 = vld [vmem:[%s0] sm:$0xff]
    %v63 = vld [vmem:[#allocation2] sm:$0xff]
    %v64 = vld [vmem:[#allocation2 + $0x8] sm:$0xff]
    %v65 = vld [vmem:[#allocation2 + $0x10] sm:$0xff]
    %v66 = vld [vmem:[#allocation2 + $0x18] sm:$0xff]
    %v67 = vld [vmem:[#allocation2 + $0x20] sm:$0xff]
    %v68 = vld [vmem:[#allocation2 + $0x28] sm:$0xff]
    %v69 = vld [vmem:[#allocation2 + $0x30] sm:$0xff]
    %v70 = vld [vmem:[#allocation2 + $0x38] sm:$0xff]
    %v71 = vld [vmem:[#allocation2 + $0x40] sm:$0xff]
    %v72 = vld [vmem:[#allocation2 + $0x48] sm:$0xff]
    %v73 = vld [vmem:[#allocation2 + $0x50] sm:$0xff]
    %v74 = vld [vmem:[#allocation2 + $0x58] sm:$0xff]
    %v75 = vld [vmem:[#allocation2 + $0x60] sm:$0xff]
    %v76 = vld [vmem:[#allocation2 + $0x68] sm:$0xff]
    %v77 = vld [vmem:[#allocation2 + $0x70] sm:$0xff]
    %v78 = vld [vmem:[#allocation2 + $0x78] sm:$0xff]
    %v79 = vld [vmem:[%s4] sm:$0x1]
    %v80 = vld [vmem:[%s4 + $0x1] sm:$0x1]
    %81 = vmatprep.subr.mxu0 0.0
    %82 = vmatpush1.msra.mxu0 %v63
    %83 = vmatprep.subr.mxu0 0.0
    %84 = vmatpush1.msra.mxu0 %v64
    %85 = vmatprep.subr.mxu0 0.0
    %86 = vmatpush1.msra.mxu0 %v65
    %87 = vmatprep.subr.mxu0 0.0
    %88 = vmatpush1.msra.mxu0 %v66
    %89 = vmatprep.subr.mxu0 0.0
    %90 = vmatpush1.msra.mxu0 %v67
    %91 = vmatprep.subr.mxu0 0.0
    %92 = vmatpush1.msra.mxu0 %v68
    %93 = vmatprep.subr.mxu0 0.0
    %94 = vmatpush1.msra.mxu0 %v69
    %95 = vmatprep.subr.mxu0 0.0
    %96 = vmatpush1.msra.mxu0 %v70
    %97 = vmatprep.subr.mxu0 0.0
    %98 = vmatpush1.msra.mxu0 %v71
    %99 = vmatprep.subr.mxu0 0.0
    %100 = vmatpush1.msra.mxu0 %v72
    %101 = vmatprep.subr.mxu0 0.0
    %102 = vmatpush1.msra.mxu0 %v73
    %103 = vmatprep.subr.mxu0 0.0
    %104 = vmatpush1.msra.mxu0 %v74
    %105 = vmatprep.subr.mxu0 0.0
    %106 = vmatpush1.msra.mxu0 %v75
    %107 = vmatprep.subr.mxu0 0.0
    %108 = vmatpush1.msra.mxu0 %v76
    %109 = vmatprep.subr.mxu0 0.0
    %110 = vmatpush1.msra.mxu0 %v77
    %111 = vmatprep.subr.mxu0 0.0
    %112 = vmatpush1.msra.mxu0 %v78
    %113 = vmatprep.subr.mxu0 0.0
    %114 = vmatpush1.msra.mxu0 0.0
    %115 = vmatprep.subr.mxu0 0.0
    %116 = vmatpush1.msra.mxu0 0.0
    %117 = vmatprep.subr.mxu0 0.0
    %118 = vmatpush1.msra.mxu0 0.0
    %119 = vmatprep.subr.mxu0 0.0
    %120 = vmatpush1.msra.mxu0 0.0
    %121 = vmatprep.subr.mxu0 0.0
    %122 = vmatpush1.msra.mxu0 0.0
    %123 = vmatprep.subr.mxu0 0.0
    %124 = vmatpush1.msra.mxu0 0.0
    %125 = vmatprep.subr.mxu0 0.0
    %126 = vmatpush1.msra.mxu0 0.0
    %127 = vmatprep.subr.mxu0 0.0
    %128 = vmatpush1.msra.mxu0 0.0
    %129 = vmatprep.subr.mxu0 0.0
    %130 = vmatpush1.msra.mxu0 0.0
    %131 = vmatprep.subr.mxu0 0.0
    %132 = vmatpush1.msra.mxu0 0.0
    %133 = vmatprep.subr.mxu0 0.0
    %134 = vmatpush1.msra.mxu0 0.0
    %135 = vmatprep.subr.mxu0 0.0
    %136 = vmatpush1.msra.mxu0 0.0
    %137 = vmatprep.subr.mxu0 0.0
    %138 = vmatpush1.msra.mxu0 0.0
    %139 = vmatprep.subr.mxu0 0.0
    %140 = vmatpush1.msra.mxu0 0.0
    %141 = vmatprep.subr.mxu0 0.0
    %142 = vmatpush1.msra.mxu0 0.0
    %143 = vmatprep.subr.mxu0 0.0
    %144 = vmatpush1.msra.mxu0 0.0
    %145 = vmatprep.mubr.f32.mxu0 0.0
    %146 = vmatmul.mubr.f32.gmra.mrb[0].mxu0 %v62
    %v147 = vpop.f32.mrb[0].mxu0
    %v148 = vadd.f32 0.0, %v147
    %v149 = vpop.f32.mrb[0].mxu0
    %150 = vdwg.mxu0
    %v151 = vrot.slane %v148, 4
    %v152 = vadd.f32 %v148, %v151
    %v153 = vrot.slane %v152, 2
    %v154 = vadd.f32 %v152, %v153
    %v155 = vrot.slane %v154, 1
    %v156 = vadd.f32 %v154, %v155
    %v157 = vmul.f32 %v156, 0.125
    %v158 = vmul.f32 %v148, %v148
    %v159 = vrot.slane %v158, 4
    %v160 = vadd.f32 %v158, %v159
    %v161 = vrot.slane %v160, 2
    %v162 = vadd.f32 %v160, %v161
    %v163 = vrot.slane %v162, 1
    %v164 = vadd.f32 %v162, %v163
    %v165 = vmul.f32 %v164, 0.125
    %v166 = vmul.f32 %v157, %v157
    %v167 = vsub.f32 %v165, %v166
    %v168 = vmax.f32 %v167, 0.0
    %v169 = vadd.f32 %v168, 1e-05
    %v170 = vrsqrt.pop %v169
    %v171 = vmul.f32 %v79, %v170
    %v172 = vmul.f32 %v157, %v171
    %v173 = vsub.f32 %v80, %v172
    %v174 = vlaneseq
    %v175 = vshrl.u32 %v174, 7
    %v176 = vsub.s32 0, %v175
    %v177 = vrot.slane %v171, %v176
    %v178 = vmul.f32 %v148, %v177
    %v179 = vlaneseq
    %v180 = vshrl.u32 %v179, 7
    %v181 = vsub.s32 0, %v180
    %v182 = vrot.slane %v173, %v181
    %v183 = vadd.f32 %v178, %v182
    %v184 = vmax.f32 %v183, 0.0
    %v185 = vld [vmem:[#allocation5] sm:$0xff]
    %v186 = vld [vmem:[#allocation5 + $0x8] sm:$0xff]
    %v187 = vld [vmem:[#allocation5 + $0x10] sm:$0xff]
    %v188 = vld [vmem:[#allocation5 + $0x18] sm:$0xff]
    %v189 = vld [vmem:[#allocation5 + $0x20] sm:$0xff]
    %v190 = vld [vmem:[#allocation5 + $0x28] sm:$0xff]
    %v191 = vld [vmem:[#allocation5 + $0x30] sm:$0xff]
    %v192 = vld [vmem:[#allocation5 + $0x38] sm:$0xff]
    %v193 = vld [vmem:[#allocation5 + $0x40] sm:$0xff]
    %v194 = vld [vmem:[#allocation5 + $0x48] sm:$0xff]
    %v195 = vld [vmem:[#allocation5 + $0x50] sm:$0xff]
    %v196 = vld [vmem:[#allocation5 + $0x58] sm:$0xff]
    %v197 = vld [vmem:[#allocation5 + $0x60] sm:$0xff]
    %v198 = vld [vmem:[#allocation5 + $0x68] sm:$0xff]
    %v199 = vld [vmem:[#allocation5 + $0x70] sm:$0xff]
    %v200 = vld [vmem:[#allocation5 + $0x78] sm:$0xff]
    %v201 = vld [vmem:[%s4 + $0x2] sm:$0x1]
    %v202 = vld [vmem:[%s4 + $0x3] sm:$0x1]
    %203 = vmatprep.subr.mxu0 0.0
    %204 = vmatpush1.msra.mxu0 %v185
    %205 = vmatprep.subr.mxu0 0.0
    %206 = vmatpush1.msra.mxu0 %v186
    %207 = vmatprep.subr.mxu0 0.0
    %208 = vmatpush1.msra.mxu0 %v187
    %209 = vmatprep.subr.mxu0 0.0
    %210 = vmatpush1.msra.mxu0 %v188
    %211 = vmatprep.subr.mxu0 0.0
    %212 = vmatpush1.msra.mxu0 %v189
    %213 = vmatprep.subr.mxu0 0.0
    %214 = vmatpush1.msra.mxu0 %v190
    %215 = vmatprep.subr.mxu0 0.0
    %216 = vmatpush1.msra.mxu0 %v191
    %217 = vmatprep.subr.mxu0 0.0
    %218 = vmatpush1.msra.mxu0 %v192
    %219 = vmatprep.subr.mxu0 0.0
    %220 = vmatpush1.msra.mxu0 %v193
    %221 = vmatprep.subr.mxu0 0.0
    %222 = vmatpush1.msra.mxu0 %v194
    %223 = vmatprep.subr.mxu0 0.0
    %224 = vmatpush1.msra.mxu0 %v195
    %225 = vmatprep.subr.mxu0 0.0
    %226 = vmatpush1.msra.mxu0 %v196
    %227 = vmatprep.subr.mxu0 0.0
    %228 = vmatpush1.msra.mxu0 %v197
    %229 = vmatprep.subr.mxu0 0.0
    %230 = vmatpush1.msra.mxu0 %v198
    %231 = vmatprep.subr.mxu0 0.0
    %232 = vmatpush1.msra.mxu0 %v199
    %233 = vmatprep.subr.mxu0 0.0
    %234 = vmatpush1.msra.mxu0 %v200
    %235 = vmatprep.subr.mxu0 0.0
    %236 = vmatpush1.msra.mxu0 0.0
    %237 = vmatprep.subr.mxu0 0.0
    %238 = vmatpush1.msra.mxu0 0.0
    %239 = vmatprep.subr.mxu0 0.0
    %240 = vmatpush1.msra.mxu0 0.0
    %241 = vmatprep.subr.mxu0 0.0
    %242 = vmatpush1.msra.mxu0 0.0
    %243 = vmatprep.subr.mxu0 0.0
    %244 = vmatpush1.msra.mxu0 0.0
    %245 = vmatprep.subr.mxu0 0.0
    %246 = vmatpush1.msra.mxu0 0.0
    %247 = vmatprep.subr.mxu0 0.0
    %248 = vmatpush1.msra.mxu0 0.0
    %249 = vmatprep.subr.mxu0 0.0
    %250 = vmatpush1.msra.mxu0 0.0
    %251 = vmatprep.subr.mxu0 0.0
    %252 = vmatpush1.msra.mxu0 0.0
    %253 = vmatprep.subr.mxu0 0.0
    %254 = vmatpush1.msra.mxu0 0.0
    %255 = vmatprep.subr.mxu0 0.0
    %256 = vmatpush1.msra.mxu0 0.0
    %257 = vmatprep.subr.mxu0 0.0
    %258 = vmatpush1.msra.mxu0 0.0
    %259 = vmatprep.subr.mxu0 0.0
    %260 = vmatpush1.msra.mxu0 0.0
    %261 = vmatprep.subr.mxu0 0.0
    %262 = vmatpush1.msra.mxu0 0.0
    %263 = vmatprep.subr.mxu0 0.0
    %264 = vmatpush1.msra.mxu0 0.0
    %265 = vmatprep.subr.mxu0 0.0
    %266 = vmatpush1.msra.mxu0 0.0
    %267 = vmatprep.mubr.f32.mxu0 0.0
    %268 = vmatmul.mubr.f32.gmra.mrb[0].mxu0 %v184
    %v269 = vpop.f32.mrb[0].mxu0
    %v270 = vadd.f32 0.0, %v269
    %v271 = vpop.f32.mrb[0].mxu0
    %272 = vdwg.mxu0
    %v273 = vrot.slane %v270, 4
    %v274 = vadd.f32 %v270, %v273
    %v275 = vrot.slane %v274, 2
    %v276 = vadd.f32 %v274, %v275
    %v277 = vrot.slane %v276, 1
    %v278 = vadd.f32 %v276, %v277
    %v279 = vmul.f32 %v278, 0.125
    %v280 = vmul.f32 %v270, %v270
    %v281 = vrot.slane %v280, 4
    %v282 = vadd.f32 %v280, %v281
    %v283 = vrot.slane %v282, 2
    %v284 = vadd.f32 %v282, %v283
    %v285 = vrot.slane %v284, 1
    %v286 = vadd.f32 %v284, %v285
    %v287 = vmul.f32 %v286, 0.125
    %v288 = vmul.f32 %v279, %v279
    %v289 = vsub.f32 %v287, %v288
    %v290 = vmax.f32 %v289, 0.0
    %v291 = vadd.f32 %v290, 1e-05
    %v292 = vrsqrt.pop %v291
    %v293 = vmul.f32 %v201, %v292
    %v294 = vmul.f32 %v279, %v293
    %v295 = vsub.f32 %v202, %v294
    %v296 = vlaneseq
    %v297 = vshrl.u32 %v296, 7
    %v298 = vsub.s32 0, %v297
    %v299 = vrot.slane %v293, %v298
    %v300 = vmul.f32 %v270, %v299
    %v301 = vlaneseq
    %v302 = vshrl.u32 %v301, 7
    %v303 = vsub.s32 0, %v302
    %v304 = vrot.slane %v295, %v303
    %v305 = vadd.f32 %v300, %v304
    %v306 = vmax.f32 %v305, 0.0
    %v307 = vld [vmem:[#allocation7] sm:$0xff]
    %v308 = vld [vmem:[#allocation7 + $0x8] sm:$0xff]
    %v309 = vld [vmem:[#allocation7 + $0x10] sm:$0xff]
    %v310 = vld [vmem:[#allocation7 + $0x18] sm:$0xff]
    %v311 = vld [vmem:[#allocation7 + $0x20] sm:$0xff]
    %v312 = vld [vmem:[#allocation7 + $0x28] sm:$0xff]
    %v313 = vld [vmem:[#allocation7 + $0x30] sm:$0xff]
    %v314 = vld [vmem:[#allocation7 + $0x38] sm:$0xff]
    %v315 = vld [vmem:[#allocation7 + $0x40] sm:$0xff]
    %v316 = vld [vmem:[#allocation7 + $0x48] sm:$0xff]
    %v317 = vld [vmem:[#allocation7 + $0x50] sm:$0xff]
    %v318 = vld [vmem:[#allocation7 + $0x58] sm:$0xff]
    %v319 = vld [vmem:[#allocation7 + $0x60] sm:$0xff]
    %v320 = vld [vmem:[#allocation7 + $0x68] sm:$0xff]
    %v321 = vld [vmem:[#allocation7 + $0x70] sm:$0xff]
    %v322 = vld [vmem:[#allocation7 + $0x78] sm:$0xff]
    %v323 = vld [vmem:[%s4 + $0x4] sm:$0x1]
    %v324 = vlaneseq
    %v325 = vshrl.u32 %v324, 7
    %v326 = vsub.s32 0, %v325
    %v327 = vrot.slane %v323, %v326
    %328 = vmatprep.subr.mxu0 0.0
    %329 = vmatpush1.msra.mxu0 %v307
    %330 = vmatprep.subr.mxu0 0.0
    %331 = vmatpush1.msra.mxu0 %v308
    %332 = vmatprep.subr.mxu0 0.0
    %333 = vmatpush1.msra.mxu0 %v309
    %334 = vmatprep.subr.mxu0 0.0
    %335 = vmatpush1.msra.mxu0 %v310
    %336 = vmatprep.subr.mxu0 0.0
    %337 = vmatpush1.msra.mxu0 %v311
    %338 = vmatprep.subr.mxu0 0.0
    %339 = vmatpush1.msra.mxu0 %v312
    %340 = vmatprep.subr.mxu0 0.0
    %341 = vmatpush1.msra.mxu0 %v313
    %342 = vmatprep.subr.mxu0 0.0
    %343 = vmatpush1.msra.mxu0 %v314
    %344 = vmatprep.subr.mxu0 0.0
    %345 = vmatpush1.msra.mxu0 %v315
    %346 = vmatprep.subr.mxu0 0.0
    %347 = vmatpush1.msra.mxu0 %v316
    %348 = vmatprep.subr.mxu0 0.0
    %349 = vmatpush1.msra.mxu0 %v317
    %350 = vmatprep.subr.mxu0 0.0
    %351 = vmatpush1.msra.mxu0 %v318
    %352 = vmatprep.subr.mxu0 0.0
    %353 = vmatpush1.msra.mxu0 %v319
    %354 = vmatprep.subr.mxu0 0.0
    %355 = vmatpush1.msra.mxu0 %v320
    %356 = vmatprep.subr.mxu0 0.0
    %357 = vmatpush1.msra.mxu0 %v321
    %358 = vmatprep.subr.mxu0 0.0
    %359 = vmatpush1.msra.mxu0 %v322
    %360 = vmatprep.subr.mxu0 0.0
    %361 = vmatpush1.msra.mxu0 0.0
    %362 = vmatprep.subr.mxu0 0.0
    %363 = vmatpush1.msra.mxu0 0.0
    %364 = vmatprep.subr.mxu0 0.0
    %365 = vmatpush1.msra.mxu0 0.0
    %366 = vmatprep.subr.mxu0 0.0
    %367 = vmatpush1.msra.mxu0 0.0
    %368 = vmatprep.subr.mxu0 0.0
    %369 = vmatpush1.msra.mxu0 0.0
    %370 = vmatprep.subr.mxu0 0.0
    %371 = vmatpush1.msra.mxu0 0.0
    %372 = vmatprep.subr.mxu0 0.0
    %373 = vmatpush1.msra.mxu0 0.0
    %374 = vmatprep.subr.mxu0 0.0
    %375 = vmatpush1.msra.mxu0 0.0
    %376 = vmatprep.subr.mxu0 0.0
    %377 = vmatpush1.msra.mxu0 0.0
    %378 = vmatprep.subr.mxu0 0.0
    %379 = vmatpush1.msra.mxu0 0.0
    %380 = vmatprep.subr.mxu0 0.0
    %381 = vmatpush1.msra.mxu0 0.0
    %382 = vmatprep.subr.mxu0 0.0
    %383 = vmatpush1.msra.mxu0 0.0
    %384 = vmatprep.subr.mxu0 0.0
    %385 = vmatpush1.msra.mxu0 0.0
    %386 = vmatprep.subr.mxu0 0.0
    %387 = vmatpush1.msra.mxu0 0.0
    %388 = vmatprep.subr.mxu0 0.0
    %389 = vmatpush1.msra.mxu0 0.0
    %390 = vmatprep.subr.mxu0 0.0
    %391 = vmatpush1.msra.mxu0 0.0
    %392 = vmatprep.mubr.f32.mxu0 0.0
    %393 = vmatmul.mubr.f32.gmra.mrb[0].mxu0 %v306
    %v394 = vpop.f32.mrb[0].mxu0
    %v395 = vadd.f32 %v327, %v394
    %v396 = vpop.f32.mrb[0].mxu0
    %397 = vdwg.mxu0
    %v398 = vtanh.pop %v395
    %399 = vst [vmem:[#allocation8] sm:$0xff] %v398
    // Predicated region
    $region34: #{hand_decoder.1} parent=1 // pred_check
      _
    $region35: #{hand_decoder.1} parent=1 // pred_check_branch
      %401 = sbr.rel (0) target = $region37
    $region36: #{hand_decoder.1} parent=1 // pred_region
      %s403 = ssub.s32 128, 128
      %404 = vsyncadd [#allocation4], %s403
      %s406 = sshll.u32 [#allocation8], 4
      %s407 = int_to_ptr.vmem [resolvable:$true] %s406
      %409 = dma.vmem_to_hbm [thread:$0]  %s407, 128, %s5, [#allocation4]
    $region37: #{hand_decoder.1} parent=1 // pred_fallthru
      _
    // Predicated region
    $region38: #{hand_decoder.1} parent=1 // pred_check
      _
    $region39: #{hand_decoder.1} parent=1 // pred_check_branch
      %411 = sbr.rel (0) target = $region41
    $region40: #{hand_decoder.1} parent=1 // pred_region
      %412 = dma.done [#allocation4], 128
    $region41: #{hand_decoder.1} parent=1 // pred_fallthru
      _
    %413 = vsyncpa [#allocation3], 1
    %414 = vsyncpa [#allocation6], 1
    %415 = vsyncpa [#allocation4], 1

</llo_original>
